<compile_context>
chip_gen: v5e
topology: v5e:2x2
jax: 0.10.0
libtpu: 0.0.40
codegen_flags: <defaults>
</compile_context>

<pallas_src>
import functools
import random

import jax
import jax.numpy as jnp
from jax.experimental import pallas as pl
from jax.experimental.pallas import tpu as pltpu


def _infonce_kernel(pos_ref, neg_ref, loss_ref, *, n_valid):
    """pos_ref: (B, 3, D), neg_ref: (B, 6, D), loss_ref: (B, 128) per-sample losses."""
    b = loss_ref.shape[0]

    p = pos_ref[...]  # (B, 3, D)
    n = neg_ref[...]  # (B, 6, D)

    def softmax_last(x):
        m = jnp.max(x, axis=-1, keepdims=True)
        e = jnp.exp(x - m)
        s = jnp.sum(e, axis=-1, keepdims=True)
        # divide -> EUP reciprocal (exp/log already live there)
        return e * pl.reciprocal(s, approx=True)

    ps = softmax_last(p)  # (B, 3, D)
    ns = softmax_last(n)  # (B, 6, D)

    # Contract over the shared last (lane) dim; no transpose materialized.
    dot = jnp.einsum("bpd,bnd->bpn", ps, ns,
                     preferred_element_type=jnp.float32)  # (B, 3, 6)
    logs = jnp.log(dot + 1e-8)                             # (B, 3, 6)

    per_sample = jnp.sum(jnp.sum(logs, axis=2), axis=1, keepdims=True)  # (B, 1)
    per_sample = -per_sample * (1.0 / 18.0)  # per-sample InfoNCE loss = -mean over 3x6 entries

    # Mask padded samples (N not necessarily a multiple of B).
    ids = pl.program_id(0) * b + jax.lax.broadcasted_iota(jnp.int32, (b, 1), 0)
    per_sample = jnp.where(ids < n_valid, per_sample, 0.0)

    # Lane-dense, unmasked store of the per-sample losses.
    loss_ref[...] = jnp.broadcast_to(per_sample, loss_ref.shape)


def _pick_block_b(n, d, budget_bytes=12 * 1024 * 1024):
    """Largest sample-batch per grid step that fits a conservative VMEM budget (v7x-safe)."""
    # per sample (f32): double-buffered pos+neg inputs (2*36*D) + softmax temps (~36*D)
    # + double-buffered (128,) output rows.
    per_sample_bytes = 108 * d + 1024
    b = budget_bytes // per_sample_bytes
    b = int(max(8, min(b, 1024)))
    n_pad8 = ((n + 7) // 8) * 8
    b = min(b, n_pad8)
    return max(8, (b // 8) * 8)


def triple_contrastive_loss_pallas(feature, neg1_idx, neg2_idx, *, block_b=None):
    """feature: [dna, mrna, mirna], each (N, D) f32. neg*_idx: (N,) int32 negative-sample ids.

    Returns scalar  sum_i( -mean(log(softmax(pos_i) @ softmax(neg_i)^T + 1e-8)) ) / (N * 9),
    matching the PyTorch TripleContrastiveLoss forward for the given negative choices.
    """
    dna, mrna, mirna = feature
    N, D = dna.shape

    # Device-side, vectorized construction (no Python per-sample loop).
    feat = jnp.stack([dna, mrna, mirna], axis=1)  # (N, 3, D) == per-sample positive stack
    neg = jnp.concatenate(
        [jnp.take(feat, neg1_idx, axis=0), jnp.take(feat, neg2_idx, axis=0)], axis=1
    )  # (N, 6, D) == per-sample negative stack (dna/mrna/mirna at n1, then at n2)

    if block_b is None:
        block_b = _pick_block_b(N, D)
    assert block_b % 8 == 0, "block_b must be a multiple of 8 (sublane alignment)"

    num_blocks = pl.cdiv(N, block_b)
    n_pad = num_blocks * block_b
    if n_pad != N:
        pad = n_pad - N
        feat = jnp.pad(feat, ((0, pad), (0, 0), (0, 0)))
        neg = jnp.pad(neg, ((0, pad), (0, 0), (0, 0)))

    per_sample = pl.pallas_call(
        functools.partial(_infonce_kernel, n_valid=N),
        out_shape=jax.ShapeDtypeStruct((n_pad, 128), jnp.float32),
        grid_spec=pltpu.PrefetchScalarGridSpec(
            num_scalar_prefetch=0,
            grid=(num_blocks,),
            in_specs=[
                pl.BlockSpec((block_b, 3, D), lambda i: (i, 0, 0)),
                pl.BlockSpec((block_b, 6, D), lambda i: (i, 0, 0)),
            ],
            out_specs=pl.BlockSpec((block_b, 128), lambda i: (i, 0)),
        ),
        compiler_params=pltpu.CompilerParams(
            dimension_semantics=("parallel",),      # independent output blocks -> megacore OK
            vmem_limit_bytes=32 * 1024 * 1024,      # explicit; block_b sized well under this
        ),
    )(feat, neg)

    # Final reduction in JAX (padded rows already zeroed by the kernel mask).
    total = jnp.sum(per_sample[:, 0])
    return total / (N * 9)


def reference_loss(feature, neg1_idx, neg2_idx):
    """Pure-JAX reference of the same math (for a sanity check)."""
    dna, mrna, mirna = feature
    feat = jnp.stack([dna, mrna, mirna], axis=1)                 # (N, 3, D)
    s = jax.nn.softmax(feat, axis=-1)
    pos = s
    neg = jnp.concatenate(
        [jnp.take(s, neg1_idx, axis=0), jnp.take(s, neg2_idx, axis=0)], axis=1
    )                                                            # (N, 6, D)
    dot = jnp.einsum("bpd,bnd->bpn", pos, neg)
    losses = -jnp.mean(jnp.log(dot + 1e-8), axis=(1, 2))
    return jnp.sum(losses) / (feat.shape[0] * 9)


if __name__ == "__main__":
    N, D = 20, 128  # sample_num, embedding dim (lane-dense last dim)

    key = jax.random.PRNGKey(0)
    k1, k2, k3 = jax.random.split(key, 3)
    dna = jax.random.normal(k1, (N, D), dtype=jnp.float32)
    mrna = jax.random.normal(k2, (N, D), dtype=jnp.float32)
    mirna = jax.random.normal(k3, (N, D), dtype=jnp.float32)
    feature = [dna, mrna, mirna]

    # Deterministic negative sampling, mirroring the module's random.choice logic (host-side,
    # inherent to the PyTorch module's semantics).
    random.seed(0)
    sample_index = list(range(N))
    n1_list, n2_list = [], []
    for i in sample_index:
        n1 = random.choice([j for j in sample_index if j != i])
        n2 = random.choice([j for j in sample_index if j not in (i, n1)])
        n1_list.append(n1)
        n2_list.append(n2)
    neg1_idx = jnp.asarray(n1_list, dtype=jnp.int32)
    neg2_idx = jnp.asarray(n2_list, dtype=jnp.int32)

    # block_b=8 forces multiple grid blocks + padding path at this small N.
    loss = triple_contrastive_loss_pallas(feature, neg1_idx, neg2_idx, block_b=8)
    loss = jax.block_until_ready(loss)

    ref = jax.block_until_ready(reference_loss(feature, neg1_idx, neg2_idx))
    # Tolerance loosened slightly for the approx (EUP) reciprocal in the softmax.
    assert jnp.allclose(loss, ref, rtol=2e-3, atol=2e-3), (loss, ref)

    print("KERNEL_OK")
</pallas_src>

<mosaic_0001>
module attributes {stable_mosaic.version = 11 : i64} {
  func.func @_infonce_kernel(%arg0: i32, %arg1: memref<8x3x128xf32, #tpu.memory_space<vmem>>, %arg2: memref<8x6x128xf32, #tpu.memory_space<vmem>>, %arg3: memref<8x128xf32, #tpu.memory_space<vmem>>) attributes {dimension_semantics = [#tpu.dimension_semantics<parallel>], iteration_bounds = array<i64: 3>, scalar_prefetch = 0 : i64, scratch_operands = 0 : i64, tpu.core_type = #tpu.core_type<tc>, window_params = [{transform_indices = @transform_0, window_bounds = array<i64: 8, 3, 128>}, {transform_indices = @transform_1, window_bounds = array<i64: 8, 6, 128>}, {transform_indices = @transform_2, window_bounds = array<i64: 8, 128>}]} {
    %c0 = arith.constant 0 : index
    %c0_0 = arith.constant 0 : index
    %c0_1 = arith.constant 0 : index
    %0 = vector.load %arg1[%c0, %c0_0, %c0_1] : memref<8x3x128xf32, #tpu.memory_space<vmem>>, vector<8x3x128xf32>
    %c0_2 = arith.constant 0 : index
    %c0_3 = arith.constant 0 : index
    %c0_4 = arith.constant 0 : index
    %1 = vector.load %arg2[%c0_2, %c0_3, %c0_4] : memref<8x6x128xf32, #tpu.memory_space<vmem>>, vector<8x6x128xf32>
    %cst = arith.constant dense<0xFF800000> : vector<8x3xf32>
    %2 = vector.multi_reduction <maximumf>, %0, %cst [2] : vector<8x3x128xf32> to vector<8x3xf32>
    %3 = vector.shape_cast %2 : vector<8x3xf32> to vector<8x3x1xf32>
    %4 = vector.broadcast %3 : vector<8x3x1xf32> to vector<8x3x128xf32>
    %5 = arith.subf %0, %4 : vector<8x3x128xf32>
    %6 = math.exp %5 : vector<8x3x128xf32>
    %cst_5 = arith.constant dense<0.000000e+00> : vector<8x3xf32>
    %7 = vector.multi_reduction <add>, %6, %cst_5 [2] : vector<8x3x128xf32> to vector<8x3xf32>
    %8 = vector.shape_cast %7 : vector<8x3xf32> to vector<8x3x1xf32>
    %9 = tpu.reciprocal %8 {approx = true} : vector<8x3x1xf32> -> vector<8x3x1xf32>
    %10 = vector.broadcast %9 : vector<8x3x1xf32> to vector<8x3x128xf32>
    %11 = arith.mulf %6, %10 : vector<8x3x128xf32>
    %cst_6 = arith.constant dense<0xFF800000> : vector<8x6xf32>
    %12 = vector.multi_reduction <maximumf>, %1, %cst_6 [2] : vector<8x6x128xf32> to vector<8x6xf32>
    %13 = vector.shape_cast %12 : vector<8x6xf32> to vector<8x6x1xf32>
    %14 = vector.broadcast %13 : vector<8x6x1xf32> to vector<8x6x128xf32>
    %15 = arith.subf %1, %14 : vector<8x6x128xf32>
    %16 = math.exp %15 : vector<8x6x128xf32>
    %cst_7 = arith.constant dense<0.000000e+00> : vector<8x6xf32>
    %17 = vector.multi_reduction <add>, %16, %cst_7 [2] : vector<8x6x128xf32> to vector<8x6xf32>
    %18 = vector.shape_cast %17 : vector<8x6xf32> to vector<8x6x1xf32>
    %19 = tpu.reciprocal %18 {approx = true} : vector<8x6x1xf32> -> vector<8x6x1xf32>
    %20 = vector.broadcast %19 : vector<8x6x1xf32> to vector<8x6x128xf32>
    %21 = arith.mulf %16, %20 : vector<8x6x128xf32>
    "tpu.trace_start"() <{level = 10 : i32, message = "bpd,bnd->bpn"}> : () -> ()
    %cst_8 = arith.constant dense<0.000000e+00> : vector<8x3x6xf32>
    %22 = tpu.matmul %11, %21, %cst_8 {dimension_numbers = #tpu.dot_dimension_numbers<[2], [2], [1], [1], [0, 0, 0, 1, 1, 1], [0], [0]>} : vector<8x3x128xf32>, vector<8x6x128xf32>, vector<8x3x6xf32> -> vector<8x3x6xf32>
    "tpu.trace_stop"() : () -> ()
    %cst_9 = arith.constant 9.99999993E-9 : f32
    %23 = vector.broadcast %cst_9 : f32 to vector<8x3x6xf32>
    %24 = arith.addf %22, %23 : vector<8x3x6xf32>
    %25 = math.log %24 : vector<8x3x6xf32>
    %cst_10 = arith.constant dense<0.000000e+00> : vector<8x3xf32>
    %26 = vector.multi_reduction <add>, %25, %cst_10 [2] : vector<8x3x6xf32> to vector<8x3xf32>
    %cst_11 = arith.constant dense<0.000000e+00> : vector<8xf32>
    %27 = vector.multi_reduction <add>, %26, %cst_11 [1] : vector<8x3xf32> to vector<8xf32>
    %28 = vector.shape_cast %27 : vector<8xf32> to vector<8x1xf32>
    %cst_12 = arith.constant 0.000000e+00 : f32
    %29 = vector.broadcast %cst_12 : f32 to vector<8x1xf32>
    %30 = arith.subf %29, %28 : vector<8x1xf32>
    %cst_13 = arith.constant 0.055555556 : f32
    %31 = vector.broadcast %cst_13 : f32 to vector<8x1xf32>
    %32 = arith.mulf %30, %31 : vector<8x1xf32>
    %c8_i32 = arith.constant 8 : i32
    %33 = arith.muli %arg0, %c8_i32 : i32
    %34 = tpu.iota {dimensions = array<i32: 0>} : vector<8x1xi32>
    %35 = vector.broadcast %33 : i32 to vector<8x1xi32>
    %36 = arith.addi %35, %34 : vector<8x1xi32>
    %c20_i32 = arith.constant 20 : i32
    %37 = vector.broadcast %c20_i32 : i32 to vector<8x1xi32>
    %38 = arith.cmpi slt, %36, %37 : vector<8x1xi32>
    %cst_14 = arith.constant 0.000000e+00 : f32
    %39 = vector.broadcast %cst_14 : f32 to vector<8x1xf32>
    %40 = arith.select %38, %32, %39 : vector<8x1xi1>, vector<8x1xf32>
    %41 = vector.shape_cast %40 : vector<8x1xf32> to vector<8x1xf32>
    %42 = vector.broadcast %41 : vector<8x1xf32> to vector<8x128xf32>
    %c0_15 = arith.constant 0 : index
    %c0_16 = arith.constant 0 : index
    %43 = vector.load %arg3[%c0_15, %c0_16] : memref<8x128xf32, #tpu.memory_space<vmem>>, vector<8x128xf32>
    tpu.vector_store %arg3[%c0_15, %c0_16], %42 {strides = array<i32>} : memref<8x128xf32, #tpu.memory_space<vmem>>, vector<8x128xf32>,
    return
  }
  func.func @transform_0(%arg0: i32) -> (i32, i32, i32) {
    %c0_i32 = arith.constant 0 : i32
    %c0_i32_0 = arith.constant 0 : i32
    %c0_i32_1 = arith.constant 0 : i32
    return %arg0, %c0_i32, %c0_i32_0 : i32, i32, i32
  }
  func.func @transform_1(%arg0: i32) -> (i32, i32, i32) {
    %c0_i32 = arith.constant 0 : i32
    %c0_i32_0 = arith.constant 0 : i32
    %c0_i32_1 = arith.constant 0 : i32
    return %arg0, %c0_i32, %c0_i32_0 : i32, i32, i32
  }
  func.func @transform_2(%arg0: i32) -> (i32, i32) {
    %c0_i32 = arith.constant 0 : i32
    %c0_i32_0 = arith.constant 0 : i32
    return %arg0, %c0_i32 : i32, i32
  }
}

</mosaic_0001>

<llo_original>
// kernel: tpu_custom_call.1
$region0: #{tpu_custom_call.1}
  #allocation0 [shape = 'u32[]', space=smem, size = 0x4, offset = 0x4, fixed_abs, tag = 'smem constant byte address 0x4 - core index']
  #allocation1 [shape = 'u32[72,128]{1,0:T(1,128)}', space=vmem, size = 0x9000, scoped, tag = 'internal scratch']
  %s0 = inlined_call_operand.vmem [shape: f32[24,3,128], index: 0, kind: input, shape index: {}]
  %s1 = inlined_call_operand.vmem [shape: f32[24,6,128], index: 1, kind: input, shape index: {}]
  %s2 = inlined_call_operand.hbm [shape: f32[24,128], index: 2, kind: output, shape index: {}]
  %s3 = sld [smem:[#allocation0]]
  $region41: #{tpu_custom_call.1} parent=0
    _
  %s5 = ssub.s32 1, %s3
  %s6 = scalar_select 0, %s5, %s3
  $region1: #{tpu_custom_call.1} parent=0
    #allocation2 [shape = 'u8[8192]{0}', space=vmem, size = 0x2000, scoped, tag = 'output window, operand 0']
    #allocation3 [shape = 's32[2]{0}', space=sflag, size = 0x8, scoped, tag = 'scoped memory for tpu_custom_call.1']
    %7 = vsyncpa [#allocation3], 0
    %s8 = scalar_lea.sflag [#allocation3], 1
    %9 = vsyncpa %s8, 0
    loop: start=0, step=1, limit=5
    $region2: #{tpu_custom_call.1} parent=1 // loop_pre_header
      _
    $region3: #{tpu_custom_call.1} parent=1 // loop_header
      %s11 = sphi 0, %s15
      %p12 = scmp.ge.s32.totalorder %s11, 5
      %s21 = sphi 0, %s23
      %s24 = sphi 0, %s21
      %s25 = sphi 0, %s24
      %s41 = sphi 0, %s25
      %s47 = sphi 0, %s49
      %s50 = sphi 0, %s47
      %s51 = sphi 0, %s50
      %s67 = sphi 0, %s51
      %s73 = sphi 0, %s75
      %s76 = sphi 0, %s73
      %s77 = sphi 0, %s76
      %s93 = sphi 0, %s77
    $region4: #{tpu_custom_call.1} parent=1 // loop_header_branch
      %14 = sbr.rel (%p12) target = $region8
    $region5: #{tpu_custom_call.1} parent=1 // loop_body
      %s16 = ssub.s32 %s11, 1
      %s17 = ssub.s32 %s11, 2
      %s18 = sadd.s32 %s11, 1
      %s19 = ssub.s32 %s11, %s18
      %p20 = scmp.eq.s32.totalorder %s19, 0
      %s22 = sadd.s32 %s21, 1
      %s23 = scalar_select %p20, %s21, %s22
      %p26 = pneg %p20
      %p27 = scmp.eq.s32.totalorder %s11, 2
      %p28 = por %p26, %p27
      %p29 = scmp.ne.s32.totalorder %s21, %s24
      %p30 = scmp.eq.s32.totalorder %s11, 0
      %p31 = por %p29, %p30
      %p32 = scmp.ne.s32.totalorder %s21, %s24
      %p33 = scmp.eq.s32.totalorder %s16, 2
      %p34 = por %p32, %p33
      %p35 = scmp.ne.s32.totalorder %s24, %s25
      %p36 = scmp.eq.s32.totalorder %s16, 0
      %p37 = por %p35, %p36
      %p38 = scmp.ne.s32.totalorder %s24, %s25
      %p39 = scmp.eq.s32.totalorder %s17, 2
      %p40 = por %p38, %p39
      %p42 = scmp.ne.s32.totalorder %s25, %s41
      %p43 = scmp.eq.s32.totalorder %s17, 0
      %p44 = por %p42, %p43
      %s45 = ssub.s32 %s11, %s18
      %p46 = scmp.eq.s32.totalorder %s45, 0
      %s48 = sadd.s32 %s47, 1
      %s49 = scalar_select %p46, %s47, %s48
      %p52 = pneg %p46
      %p53 = scmp.eq.s32.totalorder %s11, 2
      %p54 = por %p52, %p53
      %p55 = scmp.ne.s32.totalorder %s47, %s50
      %p56 = scmp.eq.s32.totalorder %s11, 0
      %p57 = por %p55, %p56
      %p58 = scmp.ne.s32.totalorder %s47, %s50
      %p59 = scmp.eq.s32.totalorder %s16, 2
      %p60 = por %p58, %p59
      %p61 = scmp.ne.s32.totalorder %s50, %s51
      %p62 = scmp.eq.s32.totalorder %s16, 0
      %p63 = por %p61, %p62
      %p64 = scmp.ne.s32.totalorder %s50, %s51
      %p65 = scmp.eq.s32.totalorder %s17, 2
      %p66 = por %p64, %p65
      %p68 = scmp.ne.s32.totalorder %s51, %s67
      %p69 = scmp.eq.s32.totalorder %s17, 0
      %p70 = por %p68, %p69
      %s71 = ssub.s32 %s11, %s18
      %p72 = scmp.eq.s32.totalorder %s71, 0
      %s74 = sadd.s32 %s73, 1
      %s75 = scalar_select %p72, %s73, %s74
      %p78 = pneg %p72
      %p79 = scmp.eq.s32.totalorder %s11, 2
      %p80 = por %p78, %p79
      %p81 = scmp.ne.s32.totalorder %s73, %s76
      %p82 = scmp.eq.s32.totalorder %s11, 0
      %p83 = por %p81, %p82
      %p84 = scmp.ne.s32.totalorder %s73, %s76
      %p85 = scmp.eq.s32.totalorder %s16, 2
      %p86 = por %p84, %p85
      %p87 = scmp.ne.s32.totalorder %s76, %s77
      %p88 = scmp.eq.s32.totalorder %s16, 0
      %p89 = por %p87, %p88
      %p90 = scmp.ne.s32.totalorder %s76, %s77
      %p91 = scmp.eq.s32.totalorder %s17, 2
      %p92 = por %p90, %p91
      %p94 = scmp.ne.s32.totalorder %s77, %s93
      %p95 = scmp.eq.s32.totalorder %s17, 0
      %p96 = por %p94, %p95
      %p97 = scmp.le.s32.totalorder 1, %s11
      %p98 = scmp.lt.s32.totalorder %s11, 4
      %p99 = pnand %p97, %p98
      %p100 = pneg %p99
      // Predicated region
      $region9: #{tpu_custom_call.1} parent=5 // pred_check
        _
      $region10: #{tpu_custom_call.1} parent=5 // pred_check_branch
        %102 = sbr.rel (%p99) target = $region12
      $region11: #{tpu_custom_call.1} parent=5 // pred_region
        %s103 = ssub.s32 %s11, 1
      $region12: #{tpu_custom_call.1} parent=5 // pred_fallthru
        _
      %p104 = scmp.lt.s32.totalorder %s11, 3
      // Predicated region
      $region13: #{tpu_custom_call.1} parent=5 // pred_check
        %p105 = pneg %p104
      $region14: #{tpu_custom_call.1} parent=5 // pred_check_branch
        %107 = sbr.rel (%p105) target = $region16
      $region15: #{tpu_custom_call.1} parent=5 // pred_region
        // Predicated region
        $region17: #{tpu_custom_call.1} parent=15 // pred_check
          %p108 = pneg %p31
        $region18: #{tpu_custom_call.1} parent=15 // pred_check_branch
          %110 = sbr.rel (%p108) target = $region20
        $region19: #{tpu_custom_call.1} parent=15 // pred_region
          %s111 = smul.u32 8, %s11
          %p112 = scmp.lt.s32.totalorder %s111, 23
          %s113 = scalar_select %p112, %s111, 23
          %s114 = smul.addr %s113, 4
          %s115 = scalar_lea.vmem %s0, %s114
          %s116 = smul.u32 8, %s11
        $region20: #{tpu_custom_call.1} parent=15 // pred_fallthru
          _
        // Predicated region
        $region21: #{tpu_custom_call.1} parent=15 // pred_check
          %p117 = pneg %p57
        $region22: #{tpu_custom_call.1} parent=15 // pred_check_branch
          %119 = sbr.rel (%p117) target = $region24
        $region23: #{tpu_custom_call.1} parent=15 // pred_region
          %s120 = smul.u32 8, %s11
          %p121 = scmp.lt.s32.totalorder %s120, 23
          %s122 = scalar_select %p121, %s120, 23
          %s123 = smul.addr %s122, 8
          %s124 = scalar_lea.vmem %s1, %s123
          %s125 = smul.u32 8, %s11
        $region24: #{tpu_custom_call.1} parent=15 // pred_fallthru
          _
      $region16: #{tpu_custom_call.1} parent=5 // pred_fallthru
        _
      %p126 = scmp.le.s32.totalorder 1, %s11
      %p127 = scmp.lt.s32.totalorder %s11, 4
      %p128 = pnand %p126, %p127
      %p129 = pneg %p128
      // Predicated region
      $region25: #{tpu_custom_call.1} parent=5 // pred_check
        _
      $region26: #{tpu_custom_call.1} parent=5 // pred_check_branch
        %131 = sbr.rel (%p128) target = $region28
      $region27: #{tpu_custom_call.1} parent=5 // pred_region
        %s132 = ssub.s32 %s11, 1
        %s133 = smul.u32 8, %s16
        %p134 = scmp.lt.s32.totalorder %s133, 23
        %s135 = scalar_select %p134, %s133, 23
        %s136 = smul.addr %s135, 4
        %s137 = scalar_lea.vmem %s0, %s136
        %p138 = pneg %p37
        %p139 = pneg %p34
        %s140 = smul.u32 8, %s16
        %p141 = scmp.lt.s32.totalorder %s140, 23
        %s142 = scalar_select %p141, %s140, 23
        %s143 = smul.addr %s142, 8
        %s144 = scalar_lea.vmem %s1, %s143
        %p145 = pneg %p63
        %p146 = pneg %p60
        %p147 = pneg %p89
        %p148 = pneg %p86
        %s149 = sand.u32 %s76, 1
        %s150 = scalar_lea.sflag [#allocation3], %s149
        %s151 = sand.u32 %s76, 1
        %s152 = smul.addr %s151, 8
        %s153 = scalar_lea.vmem [#allocation2], %s152
        %s154 = smul.u32 8, %s16
        %p155 = scmp.lt.s32.totalorder %s154, 23
        %s156 = scalar_select %p155, %s154, 23
        %s157 = smul.addr %s156, 4
        %s158 = scalar_lea.vmem %s0, %s157
        %s159 = smul.u32 8, %s16
        %s160 = smul.u32 8, %s16
        %p161 = scmp.lt.s32.totalorder %s160, 23
        %s162 = scalar_select %p161, %s160, 23
        %s163 = smul.addr %s162, 8
        %s164 = scalar_lea.vmem %s1, %s163
        %s165 = smul.u32 8, %s16
        %v166 = vld [vmem:[%s158] sm:$0x7]
        %v167 = vld [vmem:[%s158 + $0x4] sm:$0x7]
        %v168 = vld [vmem:[%s158 + $0x8] sm:$0x7]
        %v169 = vld [vmem:[%s158 + $0xc] sm:$0x7]
        %v170 = vld [vmem:[%s158 + $0x10] sm:$0x7]
        %v171 = vld [vmem:[%s158 + $0x14] sm:$0x7]
        %v172 = vld [vmem:[%s158 + $0x18] sm:$0x7]
        %v173 = vld [vmem:[%s158 + $0x1c] sm:$0x7]
        %v174 = vld [vmem:[%s164] sm:$0x3f]
        %v175 = vld [vmem:[%s164 + $0x8] sm:$0x3f]
        %v176 = vld [vmem:[%s164 + $0x10] sm:$0x3f]
        %v177 = vld [vmem:[%s164 + $0x18] sm:$0x3f]
        %v178 = vld [vmem:[%s164 + $0x20] sm:$0x3f]
        %v179 = vld [vmem:[%s164 + $0x28] sm:$0x3f]
        %v180 = vld [vmem:[%s164 + $0x30] sm:$0x3f]
        %v181 = vld [vmem:[%s164 + $0x38] sm:$0x3f]
        %vm182 = vcmask 1042432
        %v183 = vsel %vm182, %v166, -inf
        %184 = vmax.xlane.f32.xlu0 %v183
        %v185 = vpop.xlane.xlu0 %184
        %v186 = vsel %vm182, %v167, -inf
        %187 = vmax.xlane.f32.xlu0 %v186
        %v188 = vpop.xlane.xlu0 %187
        %v189 = vsel %vm182, %v168, -inf
        %190 = vmax.xlane.f32.xlu0 %v189
        %v191 = vpop.xlane.xlu0 %190
        %v192 = vsel %vm182, %v169, -inf
        %193 = vmax.xlane.f32.xlu0 %v192
        %v194 = vpop.xlane.xlu0 %193
        %v195 = vsel %vm182, %v170, -inf
        %196 = vmax.xlane.f32.xlu0 %v195
        %v197 = vpop.xlane.xlu0 %196
        %v198 = vsel %vm182, %v171, -inf
        %199 = vmax.xlane.f32.xlu0 %v198
        %v200 = vpop.xlane.xlu0 %199
        %v201 = vsel %vm182, %v172, -inf
        %202 = vmax.xlane.f32.xlu0 %v201
        %v203 = vpop.xlane.xlu0 %202
        %v204 = vsel %vm182, %v173, -inf
        %205 = vmax.xlane.f32.xlu0 %v204
        %v206 = vpop.xlane.xlu0 %205
        %v207 = vsub.f32 %v166, %v185
        %v208 = vsub.f32 %v167, %v188
        %v209 = vsub.f32 %v168, %v191
        %v210 = vsub.f32 %v169, %v194
        %v211 = vsub.f32 %v170, %v197
        %v212 = vsub.f32 %v171, %v200
        %v213 = vsub.f32 %v172, %v203
        %v214 = vsub.f32 %v173, %v206
        %v215 = vmul.f32 %v207, 1.442695
        %v216 = vpow.pop %v215
        %v217 = vmul.f32 %v208, 1.442695
        %v218 = vpow.pop %v217
        %v219 = vmul.f32 %v209, 1.442695
        %v220 = vpow.pop %v219
        %v221 = vmul.f32 %v210, 1.442695
        %v222 = vpow.pop %v221
        %v223 = vmul.f32 %v211, 1.442695
        %v224 = vpow.pop %v223
        %v225 = vmul.f32 %v212, 1.442695
        %v226 = vpow.pop %v225
        %v227 = vmul.f32 %v213, 1.442695
        %v228 = vpow.pop %v227
        %v229 = vmul.f32 %v214, 1.442695
        %v230 = vpow.pop %v229
        %v231 = vsel %vm182, %v216, 0.0
        %232 = vadd.xlane.f32.xlu0 %v231
        %v233 = vpop.xlane.xlu0 %232
        %v234 = vsel %vm182, %v218, 0.0
        %235 = vadd.xlane.f32.xlu0 %v234
        %v236 = vpop.xlane.xlu0 %235
        %v237 = vsel %vm182, %v220, 0.0
        %238 = vadd.xlane.f32.xlu0 %v237
        %v239 = vpop.xlane.xlu0 %238
        %v240 = vsel %vm182, %v222, 0.0
        %241 = vadd.xlane.f32.xlu0 %v240
        %v242 = vpop.xlane.xlu0 %241
        %v243 = vsel %vm182, %v224, 0.0
        %244 = vadd.xlane.f32.xlu0 %v243
        %v245 = vpop.xlane.xlu0 %244
        %v246 = vsel %vm182, %v226, 0.0
        %247 = vadd.xlane.f32.xlu0 %v246
        %v248 = vpop.xlane.xlu0 %247
        %v249 = vsel %vm182, %v228, 0.0
        %250 = vadd.xlane.f32.xlu0 %v249
        %v251 = vpop.xlane.xlu0 %250
        %v252 = vsel %vm182, %v230, 0.0
        %253 = vadd.xlane.f32.xlu0 %v252
        %v254 = vpop.xlane.xlu0 %253
        %v255 = vrcp.pop %v233
        %v256 = vrcp.pop %v236
        %v257 = vrcp.pop %v239
        %v258 = vrcp.pop %v242
        %v259 = vrcp.pop %v245
        %v260 = vrcp.pop %v248
        %v261 = vrcp.pop %v251
        %v262 = vrcp.pop %v254
        %v263 = vmul.f32 %v216, %v255
        %v264 = vmul.f32 %v218, %v256
        %v265 = vmul.f32 %v220, %v257
        %v266 = vmul.f32 %v222, %v258
        %v267 = vmul.f32 %v224, %v259
        %v268 = vmul.f32 %v226, %v260
        %v269 = vmul.f32 %v228, %v261
        %v270 = vmul.f32 %v230, %v262
        %vm271 = vcmask 1045504
        %v272 = vsel %vm271, %v174, -inf
        %273 = vmax.xlane.f32.xlu0 %v272
        %v274 = vpop.xlane.xlu0 %273
        %v275 = vsel %vm271, %v175, -inf
        %276 = vmax.xlane.f32.xlu0 %v275
        %v277 = vpop.xlane.xlu0 %276
        %v278 = vsel %vm271, %v176, -inf
        %279 = vmax.xlane.f32.xlu0 %v278
        %v280 = vpop.xlane.xlu0 %279
        %v281 = vsel %vm271, %v177, -inf
        %282 = vmax.xlane.f32.xlu0 %v281
        %v283 = vpop.xlane.xlu0 %282
        %v284 = vsel %vm271, %v178, -inf
        %285 = vmax.xlane.f32.xlu0 %v284
        %v286 = vpop.xlane.xlu0 %285
        %v287 = vsel %vm271, %v179, -inf
        %288 = vmax.xlane.f32.xlu0 %v287
        %v289 = vpop.xlane.xlu0 %288
        %v290 = vsel %vm271, %v180, -inf
        %291 = vmax.xlane.f32.xlu0 %v290
        %v292 = vpop.xlane.xlu0 %291
        %v293 = vsel %vm271, %v181, -inf
        %294 = vmax.xlane.f32.xlu0 %v293
        %v295 = vpop.xlane.xlu0 %294
        %v296 = vsub.f32 %v174, %v274
        %v297 = vsub.f32 %v175, %v277
        %v298 = vsub.f32 %v176, %v280
        %v299 = vsub.f32 %v177, %v283
        %v300 = vsub.f32 %v178, %v286
        %v301 = vsub.f32 %v179, %v289
        %v302 = vsub.f32 %v180, %v292
        %v303 = vsub.f32 %v181, %v295
        %v304 = vmul.f32 %v296, 1.442695
        %v305 = vpow.pop %v304
        %v306 = vmul.f32 %v297, 1.442695
        %v307 = vpow.pop %v306
        %v308 = vmul.f32 %v298, 1.442695
        %v309 = vpow.pop %v308
        %v310 = vmul.f32 %v299, 1.442695
        %v311 = vpow.pop %v310
        %v312 = vmul.f32 %v300, 1.442695
        %v313 = vpow.pop %v312
        %v314 = vmul.f32 %v301, 1.442695
        %v315 = vpow.pop %v314
        %v316 = vmul.f32 %v302, 1.442695
        %v317 = vpow.pop %v316
        %v318 = vmul.f32 %v303, 1.442695
        %v319 = vpow.pop %v318
        %v320 = vsel %vm271, %v305, 0.0
        %321 = vadd.xlane.f32.xlu0 %v320
        %v322 = vpop.xlane.xlu0 %321
        %v323 = vsel %vm271, %v307, 0.0
        %324 = vadd.xlane.f32.xlu0 %v323
        %v325 = vpop.xlane.xlu0 %324
        %v326 = vsel %vm271, %v309, 0.0
        %327 = vadd.xlane.f32.xlu0 %v326
        %v328 = vpop.xlane.xlu0 %327
        %v329 = vsel %vm271, %v311, 0.0
        %330 = vadd.xlane.f32.xlu0 %v329
        %v331 = vpop.xlane.xlu0 %330
        %v332 = vsel %vm271, %v313, 0.0
        %333 = vadd.xlane.f32.xlu0 %v332
        %v334 = vpop.xlane.xlu0 %333
        %v335 = vsel %vm271, %v315, 0.0
        %336 = vadd.xlane.f32.xlu0 %v335
        %v337 = vpop.xlane.xlu0 %336
        %v338 = vsel %vm271, %v317, 0.0
        %339 = vadd.xlane.f32.xlu0 %v338
        %v340 = vpop.xlane.xlu0 %339
        %v341 = vsel %vm271, %v319, 0.0
        %342 = vadd.xlane.f32.xlu0 %v341
        %v343 = vpop.xlane.xlu0 %342
        %v344 = vrcp.pop %v322
        %v345 = vrcp.pop %v325
        %v346 = vrcp.pop %v328
        %v347 = vrcp.pop %v331
        %v348 = vrcp.pop %v334
        %v349 = vrcp.pop %v337
        %v350 = vrcp.pop %v340
        %v351 = vrcp.pop %v343
        %v352 = vmul.f32 %v305, %v344
        %v353 = vmul.f32 %v307, %v345
        %v354 = vmul.f32 %v309, %v346
        %v355 = vmul.f32 %v311, %v347
        %v356 = vmul.f32 %v313, %v348
        %v357 = vmul.f32 %v315, %v349
        %v358 = vmul.f32 %v317, %v350
        %v359 = vmul.f32 %v319, %v351
        %360 = vmatpush.xpose.msra.mxu0 0.0
        %361 = vmatpush.xpose.msra.mxu0 0.0
        %362 = vmatpush.xpose.msra.mxu0 0.0
        %363 = vmatpush.xpose.msra.mxu0 0.0
        %364 = vmatpush.xpose.msra.mxu0 0.0
        %365 = vmatpush.xpose.msra.mxu0 0.0
        %366 = vmatpush.xpose.msra.mxu0 0.0
        %367 = vmatpush.xpose.msra.mxu0 0.0
        %368 = vmatpush.xpose.msra.mxu0 0.0
        %369 = vmatpush.xpose.msra.mxu0 0.0
        %370 = vmatpush.xpose.msra.mxu0 0.0
        %371 = vmatpush.xpose.msra.mxu0 0.0
        %372 = vmatpush.xpose.msra.mxu0 0.0
        %373 = vmatpush.xpose.msra.mxu0 0.0
        %374 = vmatpush.xpose.msra.mxu0 0.0
        %375 = vmatpush.xpose.msra.mxu0 %v352
        %376 = vmatmul.f32.gmra.mxu0 %v263
        %v377 = vpop.f32.mrf.mxu0
        %v378 = vadd.f32 1e-08, %v377
        %379 = vdwg.mxu0
        %380 = vmatpush.xpose.msra.mxu0 0.0
        %381 = vmatpush.xpose.msra.mxu0 0.0
        %382 = vmatpush.xpose.msra.mxu0 0.0
        %383 = vmatpush.xpose.msra.mxu0 0.0
        %384 = vmatpush.xpose.msra.mxu0 0.0
        %385 = vmatpush.xpose.msra.mxu0 0.0
        %386 = vmatpush.xpose.msra.mxu0 0.0
        %387 = vmatpush.xpose.msra.mxu0 0.0
        %388 = vmatpush.xpose.msra.mxu0 0.0
        %389 = vmatpush.xpose.msra.mxu0 0.0
        %390 = vmatpush.xpose.msra.mxu0 0.0
        %391 = vmatpush.xpose.msra.mxu0 0.0
        %392 = vmatpush.xpose.msra.mxu0 0.0
        %393 = vmatpush.xpose.msra.mxu0 0.0
        %394 = vmatpush.xpose.msra.mxu0 0.0
        %395 = vmatpush.xpose.msra.mxu0 %v353
        %396 = vmatmul.f32.gmra.mxu0 %v264
        %v397 = vpop.f32.mrf.mxu0
        %v398 = vadd.f32 1e-08, %v397
        %399 = vdwg.mxu0
        %400 = vmatpush.xpose.msra.mxu0 0.0
        %401 = vmatpush.xpose.msra.mxu0 0.0
        %402 = vmatpush.xpose.msra.mxu0 0.0
        %403 = vmatpush.xpose.msra.mxu0 0.0
        %404 = vmatpush.xpose.msra.mxu0 0.0
        %405 = vmatpush.xpose.msra.mxu0 0.0
        %406 = vmatpush.xpose.msra.mxu0 0.0
        %407 = vmatpush.xpose.msra.mxu0 0.0
        %408 = vmatpush.xpose.msra.mxu0 0.0
        %409 = vmatpush.xpose.msra.mxu0 0.0
        %410 = vmatpush.xpose.msra.mxu0 0.0
        %411 = vmatpush.xpose.msra.mxu0 0.0
        %412 = vmatpush.xpose.msra.mxu0 0.0
        %413 = vmatpush.xpose.msra.mxu0 0.0
        %414 = vmatpush.xpose.msra.mxu0 0.0
        %415 = vmatpush.xpose.msra.mxu0 %v354
        %416 = vmatmul.f32.gmra.mxu0 %v265
        %v417 = vpop.f32.mrf.mxu0
        %v418 = vadd.f32 1e-08, %v417
        %419 = vdwg.mxu0
        %420 = vmatpush.xpose.msra.mxu0 0.0
        %421 = vmatpush.xpose.msra.mxu0 0.0
        %422 = vmatpush.xpose.msra.mxu0 0.0
        %423 = vmatpush.xpose.msra.mxu0 0.0
        %424 = vmatpush.xpose.msra.mxu0 0.0
        %425 = vmatpush.xpose.msra.mxu0 0.0
        %426 = vmatpush.xpose.msra.mxu0 0.0
        %427 = vmatpush.xpose.msra.mxu0 0.0
        %428 = vmatpush.xpose.msra.mxu0 0.0
        %429 = vmatpush.xpose.msra.mxu0 0.0
        %430 = vmatpush.xpose.msra.mxu0 0.0
        %431 = vmatpush.xpose.msra.mxu0 0.0
        %432 = vmatpush.xpose.msra.mxu0 0.0
        %433 = vmatpush.xpose.msra.mxu0 0.0
        %434 = vmatpush.xpose.msra.mxu0 0.0
        %435 = vmatpush.xpose.msra.mxu0 %v355
        %436 = vmatmul.f32.gmra.mxu0 %v266
        %v437 = vpop.f32.mrf.mxu0
        %v438 = vadd.f32 1e-08, %v437
        %439 = vdwg.mxu0
        %440 = vmatpush.xpose.msra.mxu0 0.0
        %441 = vmatpush.xpose.msra.mxu0 0.0
        %442 = vmatpush.xpose.msra.mxu0 0.0
        %443 = vmatpush.xpose.msra.mxu0 0.0
        %444 = vmatpush.xpose.msra.mxu0 0.0
        %445 = vmatpush.xpose.msra.mxu0 0.0
        %446 = vmatpush.xpose.msra.mxu0 0.0
        %447 = vmatpush.xpose.msra.mxu0 0.0
        %448 = vmatpush.xpose.msra.mxu0 0.0
        %449 = vmatpush.xpose.msra.mxu0 0.0
        %450 = vmatpush.xpose.msra.mxu0 0.0
        %451 = vmatpush.xpose.msra.mxu0 0.0
        %452 = vmatpush.xpose.msra.mxu0 0.0
        %453 = vmatpush.xpose.msra.mxu0 0.0
        %454 = vmatpush.xpose.msra.mxu0 0.0
        %455 = vmatpush.xpose.msra.mxu0 %v356
        %456 = vmatmul.f32.gmra.mxu0 %v267
        %v457 = vpop.f32.mrf.mxu0
        %v458 = vadd.f32 1e-08, %v457
        %459 = vdwg.mxu0
        %460 = vmatpush.xpose.msra.mxu0 0.0
        %461 = vmatpush.xpose.msra.mxu0 0.0
        %462 = vmatpush.xpose.msra.mxu0 0.0
        %463 = vmatpush.xpose.msra.mxu0 0.0
        %464 = vmatpush.xpose.msra.mxu0 0.0
        %465 = vmatpush.xpose.msra.mxu0 0.0
        %466 = vmatpush.xpose.msra.mxu0 0.0
        %467 = vmatpush.xpose.msra.mxu0 0.0
        %468 = vmatpush.xpose.msra.mxu0 0.0
        %469 = vmatpush.xpose.msra.mxu0 0.0
        %470 = vmatpush.xpose.msra.mxu0 0.0
        %471 = vmatpush.xpose.msra.mxu0 0.0
        %472 = vmatpush.xpose.msra.mxu0 0.0
        %473 = vmatpush.xpose.msra.mxu0 0.0
        %474 = vmatpush.xpose.msra.mxu0 0.0
        %475 = vmatpush.xpose.msra.mxu0 %v357
        %476 = vmatmul.f32.gmra.mxu0 %v268
        %v477 = vpop.f32.mrf.mxu0
        %v478 = vadd.f32 1e-08, %v477
        %479 = vdwg.mxu0
        %480 = vmatpush.xpose.msra.mxu0 0.0
        %481 = vmatpush.xpose.msra.mxu0 0.0
        %482 = vmatpush.xpose.msra.mxu0 0.0
        %483 = vmatpush.xpose.msra.mxu0 0.0
        %484 = vmatpush.xpose.msra.mxu0 0.0
        %485 = vmatpush.xpose.msra.mxu0 0.0
        %486 = vmatpush.xpose.msra.mxu0 0.0
        %487 = vmatpush.xpose.msra.mxu0 0.0
        %488 = vmatpush.xpose.msra.mxu0 0.0
        %489 = vmatpush.xpose.msra.mxu0 0.0
        %490 = vmatpush.xpose.msra.mxu0 0.0
        %491 = vmatpush.xpose.msra.mxu0 0.0
        %492 = vmatpush.xpose.msra.mxu0 0.0
        %493 = vmatpush.xpose.msra.mxu0 0.0
        %494 = vmatpush.xpose.msra.mxu0 0.0
        %495 = vmatpush.xpose.msra.mxu0 %v358
        %496 = vmatmul.f32.gmra.mxu0 %v269
        %v497 = vpop.f32.mrf.mxu0
        %v498 = vadd.f32 1e-08, %v497
        %499 = vdwg.mxu0
        %500 = vmatpush.xpose.msra.mxu0 0.0
        %501 = vmatpush.xpose.msra.mxu0 0.0
        %502 = vmatpush.xpose.msra.mxu0 0.0
        %503 = vmatpush.xpose.msra.mxu0 0.0
        %504 = vmatpush.xpose.msra.mxu0 0.0
        %505 = vmatpush.xpose.msra.mxu0 0.0
        %506 = vmatpush.xpose.msra.mxu0 0.0
        %507 = vmatpush.xpose.msra.mxu0 0.0
        %508 = vmatpush.xpose.msra.mxu0 0.0
        %509 = vmatpush.xpose.msra.mxu0 0.0
        %510 = vmatpush.xpose.msra.mxu0 0.0
        %511 = vmatpush.xpose.msra.mxu0 0.0
        %512 = vmatpush.xpose.msra.mxu0 0.0
        %513 = vmatpush.xpose.msra.mxu0 0.0
        %514 = vmatpush.xpose.msra.mxu0 0.0
        %515 = vmatpush.xpose.msra.mxu0 %v359
        %516 = vmatmul.f32.gmra.mxu0 %v270
        %v517 = vpop.f32.mrf.mxu0
        %v518 = vadd.f32 1e-08, %v517
        %519 = vdwg.mxu0
        %v520 = vlog2.pop %v378
        %v521 = vmul.f32 %v520, 0.6931472
        %v522 = vlog2.pop %v398
        %v523 = vmul.f32 %v522, 0.6931472
        %v524 = vlog2.pop %v418
        %v525 = vmul.f32 %v524, 0.6931472
        %v526 = vlog2.pop %v438
        %v527 = vmul.f32 %v526, 0.6931472
        %v528 = vlog2.pop %v458
        %v529 = vmul.f32 %v528, 0.6931472
        %v530 = vlog2.pop %v478
        %v531 = vmul.f32 %v530, 0.6931472
        %v532 = vlog2.pop %v498
        %v533 = vmul.f32 %v532, 0.6931472
        %v534 = vlog2.pop %v518
        %v535 = vmul.f32 %v534, 0.6931472
        %vm536 = vcmask 43008
        %v537 = vsel %vm536, %v521, 0.0
        %538 = vadd.xlane.f32.xlu0 %v537
        %v539 = vpop.xlane.xlu0 %538
        %v540 = vsel %vm536, %v523, 0.0
        %541 = vadd.xlane.f32.xlu0 %v540
        %v542 = vpop.xlane.xlu0 %541
        %v543 = vsel %vm536, %v525, 0.0
        %544 = vadd.xlane.f32.xlu0 %v543
        %v545 = vpop.xlane.xlu0 %544
        %v546 = vsel %vm536, %v527, 0.0
        %547 = vadd.xlane.f32.xlu0 %v546
        %v548 = vpop.xlane.xlu0 %547
        %v549 = vsel %vm536, %v529, 0.0
        %550 = vadd.xlane.f32.xlu0 %v549
        %v551 = vpop.xlane.xlu0 %550
        %v552 = vsel %vm536, %v531, 0.0
        %553 = vadd.xlane.f32.xlu0 %v552
        %v554 = vpop.xlane.xlu0 %553
        %v555 = vsel %vm536, %v533, 0.0
        %556 = vadd.xlane.f32.xlu0 %v555
        %v557 = vpop.xlane.xlu0 %556
        %v558 = vsel %vm536, %v535, 0.0
        %559 = vadd.xlane.f32.xlu0 %v558
        %v560 = vpop.xlane.xlu0 %559
        %v569 = vlaneseq
        %v570 = vand.u32 %v569, 127
        %v571 = vperm.slane %v539, %v570
        %v572 = vperm.slane %v542, %v570
        %v573 = vperm.slane %v545, %v570
        %v574 = vperm.slane %v548, %v570
        %v575 = vperm.slane %v551, %v570
        %v576 = vperm.slane %v554, %v570
        %v577 = vperm.slane %v557, %v570
        %v578 = vperm.slane %v560, %v570
        %vm579 = vcmask 1041409
        %v580 = vsel %vm579, %v572, %v571
        %vm581 = vcmask 1042434
        %v582 = vsel %vm581, %v573, %v580
        %vm583 = vcmask 1043459
        %v584 = vsel %vm583, %v574, %v582
        %vm585 = vcmask 1044484
        %v586 = vsel %vm585, %v575, %v584
        %vm587 = vcmask 1045509
        %v588 = vsel %vm587, %v576, %v586
        %vm589 = vcmask 1046534
        %v590 = vsel %vm589, %v577, %v588
        %vm591 = vcmask 1047559
        %v592 = vsel %vm591, %v578, %v590
        %vm594 = vcmask 23552
        %v595 = vsel %vm594, %v592, 0.0
        %596 = vadd.xlane.f32.xlu0 %v595
        %v597 = vpop.xlane.xlu0 %596
        %v598 = vsub.f32 0.0, %v597
        %v599 = vmul.f32 %v598, 0.055555556
        %s600 = smul.u32 %s16, 8
        %v601 = vlaneseq
        %v602 = vshrl.u32 %v601, 7
        %v603 = vstv %s600
        %v604 = vadd.s32 %v603, %v602
        %vm605 = vcmp.lt.s32.totalorder %v604, 20
        %v606 = vsel %vm605, %v599, 0.0
        %607 = vst [vmem:[%s153] sm:$0xff] %v606
        %s608 = sand.u32 %s76, 1
        %s609 = scalar_lea.sflag [#allocation3], %s608
        %s610 = sand.u32 %s76, 1
        %s611 = smul.addr %s610, 8
        %s612 = scalar_lea.vmem [#allocation2], %s611
        // Predicated region
        $region29: #{tpu_custom_call.1} parent=27 // pred_check
          %p613 = pneg %p86
        $region30: #{tpu_custom_call.1} parent=27 // pred_check_branch
          %615 = sbr.rel (%p613) target = $region32
        $region31: #{tpu_custom_call.1} parent=27 // pred_region
          %617 = vsyncadd %s609, 0
          %s618 = smul.addr %s16, 8
          %s619 = scalar_lea.hbm %s2, %s618
          %s621 = sshll.u32 %s612, 4
          %s622 = int_to_ptr.vmem [resolvable:$true] %s621
          %s623 = sshll.u32 %s619, 4
          %s624 = int_to_ptr.hbm [resolvable:$true] %s623
          %626 = dma.vmem_to_hbm [thread:$0]  %s622, 128, %s624, %s609
        $region32: #{tpu_custom_call.1} parent=27 // pred_fallthru
          _
      $region28: #{tpu_custom_call.1} parent=5 // pred_fallthru
        _
      %p627 = scmp.le.s32.totalorder 2, %s11
      // Predicated region
      $region33: #{tpu_custom_call.1} parent=5 // pred_check
        %p628 = pneg %p627
      $region34: #{tpu_custom_call.1} parent=5 // pred_check_branch
        %630 = sbr.rel (%p628) target = $region36
      $region35: #{tpu_custom_call.1} parent=5 // pred_region
        %s631 = ssub.s32 %s11, 2
        // Predicated region
        $region37: #{tpu_custom_call.1} parent=35 // pred_check
          %p632 = pneg %p92
        $region38: #{tpu_custom_call.1} parent=35 // pred_check_branch
          %634 = sbr.rel (%p632) target = $region40
        $region39: #{tpu_custom_call.1} parent=35 // pred_region
          %s635 = sand.u32 %s77, 1
          %s636 = scalar_lea.sflag [#allocation3], %s635
          %s637 = sand.u32 %s77, 1
          %s638 = smul.addr %s637, 8
          %s639 = scalar_lea.vmem [#allocation2], %s638
          %641 = dma.done %s636, 128
        $region40: #{tpu_custom_call.1} parent=35 // pred_fallthru
          _
      $region36: #{tpu_custom_call.1} parent=5 // pred_fallthru
        _
    $region6: #{tpu_custom_call.1} parent=1 // loop_footer
      %s15 = sadd.s32 1, %s11
    $region7: #{tpu_custom_call.1} parent=1 // loop_footer_branch
      %10 = sbr.rel target = $region3
    $region8: #{tpu_custom_call.1} parent=1 // loop_exit
      _
    %642 = vsyncpa [#allocation3], 1
    %s643 = scalar_lea.sflag [#allocation3], 1
    %644 = vsyncpa %s643, 1

</llo_original>
